<compile_context>
chip_gen: v5e
topology: v5e:2x2
jax: 0.10.0
libtpu: 0.0.40
codegen_flags: <defaults>
</compile_context>

<pallas_src>
import jax
import jax.numpy as jnp
from jax.experimental import pallas as pl
from jax.experimental.pallas import tpu as pltpu

EPS = 1e-6


def _round_up(n, m):
    return ((n + m - 1) // m) * m


def _pick_tn(d, tn_max):
    """Largest multiple of 128 that divides d and is <= tn_max; else full d."""
    best = None
    t = 128
    while t <= min(tn_max, d):
        if d % t == 0:
            best = t
        t += 128
    return best if best is not None else d


def sublayer_connection_kernel(
    x_ref,       # (TM, D)   full-width row tile (input dtype), resident across j
    a2_ref,      # (1, D)    LayerNorm scale (f32)
    b2_ref,      # (1, D)    LayerNorm shift (f32)
    w_ref,       # (D, TN)   sublayer weight column tile (mxu dtype, e.g. bf16)
    bsub_ref,    # (1, TN)   sublayer bias column tile (f32)
    o_ref,       # (TM, TN)  output tile
    normed_ref,  # VMEM scratch (TM, D), mxu dtype: cached LayerNorm output
):
    j = pl.program_id(1)
    tn = o_ref.shape[-1]

    # LayerNorm once per row tile (j == 0); the cached result is reused for every
    # output-column tile of the same rows.
    @pl.when(j == 0)
    def _():
        x = x_ref[...].astype(jnp.float32)                        # (TM, D)
        d = x.shape[-1]
        mean = jnp.mean(x, axis=-1, keepdims=True)                # (TM, 1)
        diff = x - mean
        # torch.std default: unbiased (ddof=1); eps added to std, not var.
        std = jnp.sqrt(
            jnp.sum(diff * diff, axis=-1, keepdims=True) * (1.0 / (d - 1)))
        inv = 1.0 / (std + EPS)   # exact divide; amortized over D/tn column steps
        # a_2 * diff / (std + eps) + b_2  ==  diff * (a_2 * inv) + b_2
        normed = diff * (a2_ref[...] * inv) + b2_ref[...]
        normed_ref[...] = normed.astype(normed_ref.dtype)

    # Sublayer: Linear(D, D) column tile on the MXU — bf16 operands, f32 accumulation.
    sub = jnp.dot(normed_ref[...], w_ref[...],
                  preferred_element_type=jnp.float32)             # (TM, TN)

    # Residual slice taken from the resident full-width tile (aligned lane-dim
    # view, no second x DMA stream).  Dropout (eval mode) is identity; sublayer
    # bias + residual folded into the single epilogue store.
    col = pl.multiple_of(j * tn, 128)
    x_res = x_ref[:, pl.ds(col, tn)].astype(jnp.float32)
    o_ref[...] = (x_res + sub + bsub_ref[...]).astype(o_ref.dtype)


def sublayer_connection(x, a2, b2, w, b_sub, *, tm=512, tn=512,
                        mxu_dtype=jnp.bfloat16, vmem_limit_bytes=None):
    """out = x + Linear(LayerNorm(x)); dropout is identity (eval mode).

    x: (B, S, D). a2, b2, b_sub: (D,). w: (D, D) stored (in, out).
    Matmul operands (normalized activations and W) run in `mxu_dtype`
    (default bf16) with f32 accumulation; LayerNorm / residual / bias are f32.
    """
    B, S, D = x.shape
    rows = B * S

    # Row tile: as large as feasible, but never bigger than the 8-aligned row
    # count so tiny inputs don't over-pad.  (On v5e/v6e's 128 MiB VMEM, tm can
    # profitably be raised to 1024 once the matmul path is bf16; on v7x keep
    # tm*D + 2*D*tn bf16 bytes well inside 64 MiB.)
    tm = min(tm, _round_up(rows, 8))
    # Output-column tile: lane-dense multiple of 128 that divides D.
    tn = _pick_tn(D, tn)

    rows_p = _round_up(rows, tm)
    x2 = x.reshape(rows, D)
    if rows_p != rows:
        x2 = jnp.pad(x2, ((0, rows_p - rows), (0, 0)))

    a2r = a2.reshape(1, D).astype(jnp.float32)
    b2r = b2.reshape(1, D).astype(jnp.float32)
    bsr = b_sub.reshape(1, D).astype(jnp.float32)
    w_mxu = w.astype(mxu_dtype)

    grid = (rows_p // tm, D // tn)

    # Rough VMEM footprint (double buffers for streamed operands) -> limit.
    itm = x2.dtype.itemsize
    imx = jnp.dtype(mxu_dtype).itemsize
    est = (2 * tm * D * itm          # x row tile (double buffered)
           + tm * D * imx            # normed scratch
           + 2 * D * tn * imx        # weight column tile (double buffered)
           + 2 * tm * tn * itm       # output tile (double buffered)
           + 4 * (2 * D + tn) * 4)   # a2 / b2 / bias
    if vmem_limit_bytes is None:
        vmem_limit_bytes = min(100 * 1024 * 1024,
                               max(32 * 1024 * 1024, 2 * est))

    out2 = pl.pallas_call(
        sublayer_connection_kernel,
        out_shape=jax.ShapeDtypeStruct((rows_p, D), x.dtype),
        grid_spec=pltpu.PrefetchScalarGridSpec(
            num_scalar_prefetch=0,
            grid=grid,
            in_specs=[
                # Full-width row tile: block index is constant across j, so it is
                # DMA'd once per row tile and stays resident (used both for the
                # LayerNorm and the residual slice).
                # TODO(synk): on v7x use pipeline_mode=pl.Buffered(1) here to drop
                # the redundant second buffer (saves tm*D bytes of VMEM).
                pl.BlockSpec((tm, D), lambda i, j: (i, 0)),
                pl.BlockSpec((1, D), lambda i, j: (0, 0)),    # a_2
                pl.BlockSpec((1, D), lambda i, j: (0, 0)),    # b_2
                # Weight streams (D, tn) column tiles: bounded VMEM even for
                # large D.  TODO(synk): for D >= 8192 on v7x add a K-split grid
                # axis with an f32 (tm, tn) accumulator scratch.
                pl.BlockSpec((D, tn), lambda i, j: (0, j)),
                pl.BlockSpec((1, tn), lambda i, j: (0, j)),   # sublayer bias
            ],
            out_specs=pl.BlockSpec((tm, tn), lambda i, j: (i, j)),
            scratch_shapes=[pltpu.VMEM((tm, D), mxu_dtype)],  # cached LayerNorm
        ),
        compiler_params=pltpu.CompilerParams(
            # Row axis is embarrassingly parallel (megacore sharding); the column
            # axis reuses the cached LayerNorm scratch -> run it in order.
            dimension_semantics=("parallel", "arbitrary"),
            vmem_limit_bytes=int(vmem_limit_bytes),
        ),
    )(x2, a2r, b2r, w_mxu, bsr)

    return out2[:rows].reshape(B, S, D)


def reference(x, a2, b2, w, b_sub, mxu_dtype=jnp.bfloat16):
    """Pure-JAX reference with the module's math and the kernel's precision policy:
    f32 LayerNorm / residual / bias; matmul operands in mxu_dtype, f32 accumulation.
    Pass mxu_dtype=jnp.float32 for the all-f32 PyTorch-eval semantics."""
    xf = x.astype(jnp.float32)
    d = xf.shape[-1]
    mean = jnp.mean(xf, axis=-1, keepdims=True)
    diff = xf - mean
    std = jnp.sqrt(jnp.sum(diff * diff, axis=-1, keepdims=True) / (d - 1))
    normed = a2 * diff / (std + EPS) + b2
    sub = jnp.dot(normed.astype(mxu_dtype), w.astype(mxu_dtype),
                  preferred_element_type=jnp.float32) + b_sub
    return (xf + sub).astype(x.dtype)


if __name__ == "__main__":
    key = jax.random.PRNGKey(0)
    keys = jax.random.split(key, 8)

    # --- Test 1: small shape (batch=2, seq=8, hidden=128), single tile. ---
    B, S, D = 2, 8, 128
    x = jax.random.normal(keys[0], (B, S, D), dtype=jnp.float32)
    # LayerNorm params as in __init__: a_2 = ones(D), b_2 = zeros(D)
    a2 = jnp.ones((D,), dtype=jnp.float32)
    b2 = jnp.zeros((D,), dtype=jnp.float32)
    # Deterministic sublayer (Linear D->D) parameters
    w = jax.random.normal(keys[1], (D, D), dtype=jnp.float32) / jnp.sqrt(D)
    b_sub = jax.random.normal(keys[2], (D,), dtype=jnp.float32) * 0.01

    out = sublayer_connection(x, a2, b2, w, b_sub)
    jax.block_until_ready(out)
    assert out.shape == (B, S, D)
    # Precision-matched reference (same bf16 matmul-operand policy): tight check.
    ref = reference(x, a2, b2, w, b_sub)
    assert jnp.allclose(out, ref, atol=2e-3, rtol=2e-3), "test1 mismatch (matched ref)"
    # Sanity check against the all-f32 module semantics (loose only because the
    # MXU operands are bf16; LayerNorm itself is exact).
    ref_f32 = reference(x, a2, b2, w, b_sub, mxu_dtype=jnp.float32)
    assert jnp.allclose(out, ref_f32, atol=5e-2, rtol=5e-2), "test1 mismatch (f32 ref)"

    # --- Test 2: multi-tile path (row padding 74 -> 80, 2 output-column tiles,
    #             exercises the j > 0 cached-LayerNorm reuse path). ---
    B2, S2, D2 = 2, 37, 256
    xb = jax.random.normal(keys[3], (B2, S2, D2), dtype=jnp.float32)
    a2b = 1.0 + 0.1 * jax.random.normal(keys[4], (D2,), dtype=jnp.float32)
    b2b = 0.1 * jax.random.normal(keys[5], (D2,), dtype=jnp.float32)
    wb = jax.random.normal(keys[6], (D2, D2), dtype=jnp.float32) / jnp.sqrt(D2)
    bsb = jax.random.normal(keys[7], (D2,), dtype=jnp.float32) * 0.01

    outb = sublayer_connection(xb, a2b, b2b, wb, bsb, tm=16, tn=128)
    jax.block_until_ready(outb)
    assert outb.shape == (B2, S2, D2)
    refb = reference(xb, a2b, b2b, wb, bsb)
    assert jnp.allclose(outb, refb, atol=2e-3, rtol=2e-3), "test2 mismatch (matched ref)"

    print("KERNEL_OK")
</pallas_src>

<mosaic_0001>
module attributes {stable_mosaic.version = 11 : i64} {
  func.func @sublayer_connection_kernel(%arg0: i32, %arg1: i32, %arg2: memref<16x128xf32, #tpu.memory_space<vmem>>, %arg3: memref<1x128xf32, #tpu.memory_space<vmem>>, %arg4: memref<1x128xf32, #tpu.memory_space<vmem>>, %arg5: memref<128x128xbf16, #tpu.memory_space<vmem>>, %arg6: memref<1x128xf32, #tpu.memory_space<vmem>>, %arg7: memref<16x128xf32, #tpu.memory_space<vmem>>, %arg8: memref<16x128xbf16, #tpu.memory_space<vmem>>) attributes {dimension_semantics = [#tpu.dimension_semantics<parallel>, #tpu.dimension_semantics<arbitrary>], iteration_bounds = array<i64: 1, 1>, scalar_prefetch = 0 : i64, scratch_operands = 1 : i64, tpu.core_type = #tpu.core_type<tc>, window_params = [{transform_indices = @transform_0, window_bounds = array<i64: 16, 128>}, {pipeline_mode = #tpu.pipeline_mode<synchronous>, transform_indices = @transform_1, window_bounds = array<i64: 1, 128>}, {pipeline_mode = #tpu.pipeline_mode<synchronous>, transform_indices = @transform_2, window_bounds = array<i64: 1, 128>}, {transform_indices = @transform_3, window_bounds = array<i64: 128, 128>}, {transform_indices = @transform_4, window_bounds = array<i64: 1, 128>}, {transform_indices = @transform_5, window_bounds = array<i64: 16, 128>}]} {
    %c0_i32 = arith.constant 0 : i32
    %0 = arith.cmpi eq, %arg1, %c0_i32 : i32
    %1 = arith.extui %0 : i1 to i32
    %c0_i32_0 = arith.constant 0 : i32
    %2 = arith.cmpi ne, %1, %c0_i32_0 : i32
    scf.if %2 {
      %c0_9 = arith.constant 0 : index
      %c0_10 = arith.constant 0 : index
      %15 = vector.load %arg2[%c0_9, %c0_10] : memref<16x128xf32, #tpu.memory_space<vmem>>, vector<16x128xf32>
      %cst_11 = arith.constant dense<0.000000e+00> : vector<16xf32>
      %16 = vector.multi_reduction <add>, %15, %cst_11 [1] : vector<16x128xf32> to vector<16xf32>
      %17 = vector.shape_cast %16 : vector<16xf32> to vector<16x1xf32>
      %cst_12 = arith.constant 1.280000e+02 : f32
      %18 = vector.broadcast %cst_12 : f32 to vector<16x1xf32>
      %19 = arith.divf %17, %18 : vector<16x1xf32>
      %20 = vector.broadcast %19 : vector<16x1xf32> to vector<16x128xf32>
      %21 = arith.subf %15, %20 : vector<16x128xf32>
      %22 = arith.mulf %21, %21 : vector<16x128xf32>
      %cst_13 = arith.constant dense<0.000000e+00> : vector<16xf32>
      %23 = vector.multi_reduction <add>, %22, %cst_13 [1] : vector<16x128xf32> to vector<16xf32>
      %24 = vector.shape_cast %23 : vector<16xf32> to vector<16x1xf32>
      %cst_14 = arith.constant 0.00787401571 : f32
      %25 = vector.broadcast %cst_14 : f32 to vector<16x1xf32>
      %26 = arith.mulf %24, %25 : vector<16x1xf32>
      %27 = math.sqrt %26 : vector<16x1xf32>
      %cst_15 = arith.constant 9.99999997E-7 : f32
      %28 = vector.broadcast %cst_15 : f32 to vector<16x1xf32>
      %29 = arith.addf %27, %28 : vector<16x1xf32>
      %cst_16 = arith.constant 1.000000e+00 : f32
      %30 = vector.broadcast %cst_16 : f32 to vector<16x1xf32>
      %31 = arith.divf %30, %29 : vector<16x1xf32>
      %c0_17 = arith.constant 0 : index
      %c0_18 = arith.constant 0 : index
      %32 = vector.load %arg3[%c0_17, %c0_18] : memref<1x128xf32, #tpu.memory_space<vmem>>, vector<1x128xf32>
      %33 = vector.broadcast %32 : vector<1x128xf32> to vector<16x128xf32>
      %34 = vector.broadcast %31 : vector<16x1xf32> to vector<16x128xf32>
      %35 = arith.mulf %33, %34 : vector<16x128xf32>
      %36 = arith.mulf %21, %35 : vector<16x128xf32>
      %c0_19 = arith.constant 0 : index
      %c0_20 = arith.constant 0 : index
      %37 = vector.load %arg4[%c0_19, %c0_20] : memref<1x128xf32, #tpu.memory_space<vmem>>, vector<1x128xf32>
      %38 = vector.broadcast %37 : vector<1x128xf32> to vector<16x128xf32>
      %39 = arith.addf %36, %38 : vector<16x128xf32>
      %40 = arith.truncf %39 : vector<16x128xf32> to vector<16x128xbf16>
      %c0_21 = arith.constant 0 : index
      %c0_22 = arith.constant 0 : index
      %41 = vector.load %arg8[%c0_21, %c0_22] : memref<16x128xbf16, #tpu.memory_space<vmem>>, vector<16x128xbf16>
      tpu.vector_store %arg8[%c0_21, %c0_22], %40 {strides = array<i32>} : memref<16x128xbf16, #tpu.memory_space<vmem>>, vector<16x128xbf16>,
    } else {
    }
    %c0 = arith.constant 0 : index
    %c0_1 = arith.constant 0 : index
    %3 = vector.load %arg8[%c0, %c0_1] : memref<16x128xbf16, #tpu.memory_space<vmem>>, vector<16x128xbf16>
    %c0_2 = arith.constant 0 : index
    %c0_3 = arith.constant 0 : index
    %4 = vector.load %arg5[%c0_2, %c0_3] : memref<128x128xbf16, #tpu.memory_space<vmem>>, vector<128x128xbf16>
    %cst = arith.constant dense<0.000000e+00> : vector<16x128xf32>
    %5 = tpu.matmul %3, %4, %cst {dimension_numbers = #tpu.dot_dimension_numbers<[1], [0], [0], [1], [0, 0, 1, 1], [], []>} : vector<16x128xbf16>, vector<128x128xbf16>, vector<16x128xf32> -> vector<16x128xf32>
    %c128_i32 = arith.constant 128 : i32
    %6 = arith.muli %arg1, %c128_i32 : i32
    %7 = tpu.assume_multiple %6, 128 : i32
    %c0_4 = arith.constant 0 : index
    %8 = arith.index_cast %7 : i32 to index
    %9 = vector.load %arg2[%c0_4, %8] : memref<16x128xf32, #tpu.memory_space<vmem>>, vector<16x128xf32>
    %10 = arith.addf %9, %5 : vector<16x128xf32>
    %c0_5 = arith.constant 0 : index
    %c0_6 = arith.constant 0 : index
    %11 = vector.load %arg6[%c0_5, %c0_6] : memref<1x128xf32, #tpu.memory_space<vmem>>, vector<1x128xf32>
    %12 = vector.broadcast %11 : vector<1x128xf32> to vector<16x128xf32>
    %13 = arith.addf %10, %12 : vector<16x128xf32>
    %c0_7 = arith.constant 0 : index
    %c0_8 = arith.constant 0 : index
    %14 = vector.load %arg7[%c0_7, %c0_8] : memref<16x128xf32, #tpu.memory_space<vmem>>, vector<16x128xf32>
    tpu.vector_store %arg7[%c0_7, %c0_8], %13 {strides = array<i32>} : memref<16x128xf32, #tpu.memory_space<vmem>>, vector<16x128xf32>,
    return
  }
  func.func @transform_0(%arg0: i32, %arg1: i32) -> (i32, i32) {
    %c0_i32 = arith.constant 0 : i32
    %c0_i32_0 = arith.constant 0 : i32
    return %arg0, %c0_i32 : i32, i32
  }
  func.func @transform_1(%arg0: i32, %arg1: i32) -> (i32, i32) {
    %c0_i32 = arith.constant 0 : i32
    %c0_i32_0 = arith.constant 0 : i32
    %c0_i32_1 = arith.constant 0 : i32
    return %c0_i32, %c0_i32_0 : i32, i32
  }
  func.func @transform_2(%arg0: i32, %arg1: i32) -> (i32, i32) {
    %c0_i32 = arith.constant 0 : i32
    %c0_i32_0 = arith.constant 0 : i32
    %c0_i32_1 = arith.constant 0 : i32
    return %c0_i32, %c0_i32_0 : i32, i32
  }
  func.func @transform_3(%arg0: i32, %arg1: i32) -> (i32, i32) {
    %c0_i32 = arith.constant 0 : i32
    %c0_i32_0 = arith.constant 0 : i32
    return %c0_i32, %arg1 : i32, i32
  }
  func.func @transform_4(%arg0: i32, %arg1: i32) -> (i32, i32) {
    %c0_i32 = arith.constant 0 : i32
    %c0_i32_0 = arith.constant 0 : i32
    return %c0_i32, %arg1 : i32, i32
  }
  func.func @transform_5(%arg0: i32, %arg1: i32) -> (i32, i32) {
    %c0_i32 = arith.constant 0 : i32
    return %arg0, %arg1 : i32, i32
  }
}

</mosaic_0001>

<llo_original>
// kernel: tpu_custom_call.1
$region0: #{tpu_custom_call.1}
  #allocation0 [shape = 'u32[]', space=smem, size = 0x4, offset = 0x4, fixed_abs, tag = 'smem constant byte address 0x4 - core index']
  #allocation1 [shape = 'u32[72,128]{1,0:T(1,128)}', space=vmem, size = 0x9000, scoped, tag = 'internal scratch']
  #allocation2 [shape = 'bf16[16,128]{1,0:T(8,128)(2,1)}', space=vmem, size = 0x1000, scoped, tag = 'scratch operand']
  %s0 = inlined_call_operand.hbm [shape: f32[16,128], index: 0, kind: input, shape index: {}]
  %s1 = inlined_call_operand.hbm [shape: f32[1,128], index: 1, kind: input, shape index: {}]
  %s2 = inlined_call_operand.vmem [shape: f32[1,128], index: 2, kind: input, shape index: {}]
  %s3 = inlined_call_operand.hbm [shape: bf16[128,128], index: 3, kind: input, shape index: {}]
  %s4 = inlined_call_operand.vmem [shape: f32[1,128], index: 4, kind: input, shape index: {}]
  %s5 = inlined_call_operand.hbm [shape: f32[16,128], index: 5, kind: output, shape index: {}]
  %s6 = sld [smem:[#allocation0]]
  $region46: #{tpu_custom_call.1} parent=0
    _
  %s8 = ssub.s32 1, %s6
  %s9 = scalar_select 0, %s8, %s6
  $region1: #{tpu_custom_call.1} parent=0
    #allocation3 [shape = 'u8[8192]{0}', space=vmem, size = 0x2000, scoped, tag = 'input window, operand 0, single buffered']
    #allocation4 [shape = 's32[1]{0}', space=sflag, size = 0x4, scoped, tag = 'scoped memory for tpu_custom_call.1']
    #allocation5 [shape = 's32[1]{0}', space=sflag, size = 0x4, scoped, tag = 'scoped memory for tpu_custom_call.1']
    #allocation6 [shape = 'u8[512]{0}', space=vmem, size = 0x400, scoped, tag = 'input window, operand 1, single buffered']
    #allocation7 [shape = 's32[1]{0}', space=sflag, size = 0x4, scoped, tag = 'scoped memory for tpu_custom_call.1']
    #allocation8 [shape = 'u8[32768]{0}', space=vmem, size = 0x8000, scoped, tag = 'input window, operand 3, single buffered']
    #allocation9 [shape = 'u8[8192]{0}', space=vmem, size = 0x2000, scoped, tag = 'output window, operand 0, single buffered']
    %10 = vsyncpa [#allocation4], 0
    %11 = vsyncpa [#allocation7], 0
    %12 = vsyncpa [#allocation5], 0
    // Predicated region
    $region2: #{tpu_custom_call.1} parent=1 // pred_check
      _
    $region3: #{tpu_custom_call.1} parent=1 // pred_check_branch
      %14 = sbr.rel (0) target = $region5
    $region4: #{tpu_custom_call.1} parent=1 // pred_region
      %16 = vsyncadd [#allocation4], 0
      %s17 = sshll.u32 %s0, 4
      %s18 = int_to_ptr.hbm [resolvable:$true] %s17
      %s19 = sshll.u32 [#allocation3], 4
      %s20 = int_to_ptr.vmem [resolvable:$true] %s19
      %25 = dma.hbm_to_vmem [thread:$0]  %s18, 256, %s20, [#allocation4], 128, 128, 8
    $region5: #{tpu_custom_call.1} parent=1 // pred_fallthru
      _
    // Predicated region
    $region6: #{tpu_custom_call.1} parent=1 // pred_check
      _
    $region7: #{tpu_custom_call.1} parent=1 // pred_check_branch
      %27 = sbr.rel (0) target = $region9
    $region8: #{tpu_custom_call.1} parent=1 // pred_region
      %29 = vsyncadd [#allocation7], 0
      %s31 = sshll.u32 %s1, 4
      %s32 = int_to_ptr.hbm [resolvable:$true] %s31
      %s33 = sshll.u32 [#allocation6], 4
      %s34 = int_to_ptr.vmem [resolvable:$true] %s33
      %36 = dma.hbm_to_vmem [thread:$0]  %s32, 16, %s34, [#allocation7]
    $region9: #{tpu_custom_call.1} parent=1 // pred_fallthru
      _
    // Predicated region
    $region10: #{tpu_custom_call.1} parent=1 // pred_check
      _
    $region11: #{tpu_custom_call.1} parent=1 // pred_check_branch
      %38 = sbr.rel (0) target = $region13
    $region12: #{tpu_custom_call.1} parent=1 // pred_region
      _
    $region13: #{tpu_custom_call.1} parent=1 // pred_fallthru
      _
    // Predicated region
    $region14: #{tpu_custom_call.1} parent=1 // pred_check
      _
    $region15: #{tpu_custom_call.1} parent=1 // pred_check_branch
      %40 = sbr.rel (0) target = $region17
    $region16: #{tpu_custom_call.1} parent=1 // pred_region
      %42 = vsyncadd [#allocation7], 0
      %s43 = sshll.u32 %s3, 4
      %s44 = int_to_ptr.hbm [resolvable:$true] %s43
      %s45 = sshll.u32 [#allocation8], 4
      %s46 = int_to_ptr.vmem [resolvable:$true] %s45
      %51 = dma.hbm_to_vmem [thread:$0]  %s44, 1024, %s46, [#allocation7], 64, 64, 4
    $region17: #{tpu_custom_call.1} parent=1 // pred_fallthru
      _
    // Predicated region
    $region18: #{tpu_custom_call.1} parent=1 // pred_check
      _
    $region19: #{tpu_custom_call.1} parent=1 // pred_check_branch
      %53 = sbr.rel (0) target = $region21
    $region20: #{tpu_custom_call.1} parent=1 // pred_region
      _
    $region21: #{tpu_custom_call.1} parent=1 // pred_fallthru
      _
    // Predicated region
    $region22: #{tpu_custom_call.1} parent=1 // pred_check
      _
    $region23: #{tpu_custom_call.1} parent=1 // pred_check_branch
      %55 = sbr.rel (0) target = $region25
    $region24: #{tpu_custom_call.1} parent=1 // pred_region
      %57 = dma.done [#allocation4], 256
    $region25: #{tpu_custom_call.1} parent=1 // pred_fallthru
      _
    // Predicated region
    $region26: #{tpu_custom_call.1} parent=1 // pred_check
      _
    $region27: #{tpu_custom_call.1} parent=1 // pred_check_branch
      %59 = sbr.rel (0) target = $region29
    $region28: #{tpu_custom_call.1} parent=1 // pred_region
      %61 = dma.done [#allocation7], 16
    $region29: #{tpu_custom_call.1} parent=1 // pred_fallthru
      _
    // Predicated region
    $region30: #{tpu_custom_call.1} parent=1 // pred_check
      _
    $region31: #{tpu_custom_call.1} parent=1 // pred_check_branch
      %63 = sbr.rel (0) target = $region33
    $region32: #{tpu_custom_call.1} parent=1 // pred_region
      %65 = dma.done [#allocation7], 1024
    $region33: #{tpu_custom_call.1} parent=1 // pred_fallthru
      _
    %p66 = scmp.eq.s32.totalorder 0, 0
    // Predicated region
    $region34: #{tpu_custom_call.1} parent=1 // pred_check
      %p67 = pneg %p66
    $region35: #{tpu_custom_call.1} parent=1 // pred_check_branch
      %69 = sbr.rel (%p67) target = $region37
    $region36: #{tpu_custom_call.1} parent=1 // pred_region
      %v70 = vld [vmem:[#allocation3] sm:$0xff]
      %v71 = vld [vmem:[#allocation3 + $0x8] sm:$0xff]
      %72 = vadd.xlane.f32.xlu0 %v70
      %v73 = vpop.xlane.xlu0 %72
      %74 = vadd.xlane.f32.xlu0 %v71
      %v75 = vpop.xlane.xlu0 %74
      %v76 = vrcp.pop 128.0
      %v77 = vmul.f32 128.0, %v76
      %v78 = vsub.f32 1.0, %v77
      %v79 = vmul.f32 %v76, %v78
      %v80 = vadd.f32 %v76, %v79
      %vm81 = vweird.f32 %v76
      %v82 = vsel %vm81, %v76, %v80
      %v83 = vmul.f32 %v73, %v82
      %v84 = vmul.f32 %v75, %v82
      %v85 = vsub.f32 %v70, %v83
      %v86 = vsub.f32 %v71, %v84
      %v87 = vmul.f32 %v85, %v85
      %v88 = vmul.f32 %v86, %v86
      %89 = vadd.xlane.f32.xlu0 %v87
      %v90 = vpop.xlane.xlu0 %89
      %91 = vadd.xlane.f32.xlu0 %v88
      %v92 = vpop.xlane.xlu0 %91
      %v93 = vmul.f32 %v90, 0.007874016
      %v94 = vmul.f32 %v92, 0.007874016
      %v95 = vrsqrt.pop %v93
      %v96 = vmul.f32 %v95, %v93
      %v97 = vmul.f32 %v96, %v95
      %v98 = vmul.f32 0.5, %v97
      %v99 = vsub.f32 1.5, %v98
      %v100 = vmul.f32 %v95, %v99
      %v101 = vmul.f32 %v93, %v100
      %vm102 = vcmp.eq.f32.partialorder %v93, inf
      %v103 = vsel %vm102, %v93, %v101
      %vm104 = vcmp.eq.f32.partialorder %v93, 0.0
      %v105 = vand.u32 %v93, 2147483648
      %v106 = vsel %vm104, %v105, %v103
      %v107 = vrsqrt.pop %v94
      %v108 = vmul.f32 %v107, %v94
      %v109 = vmul.f32 %v108, %v107
      %v110 = vmul.f32 0.5, %v109
      %v111 = vsub.f32 1.5, %v110
      %v112 = vmul.f32 %v107, %v111
      %v113 = vmul.f32 %v94, %v112
      %vm114 = vcmp.eq.f32.partialorder %v94, inf
      %v115 = vsel %vm114, %v94, %v113
      %vm116 = vcmp.eq.f32.partialorder %v94, 0.0
      %v117 = vand.u32 %v94, 2147483648
      %v118 = vsel %vm116, %v117, %v115
      %v119 = vadd.f32 %v106, 1e-06
      %v120 = vadd.f32 %v118, 1e-06
      %v121 = vrcp.pop %v119
      %v122 = vmul.f32 %v119, %v121
      %v123 = vsub.f32 1.0, %v122
      %v124 = vmul.f32 %v121, %v123
      %v125 = vadd.f32 %v121, %v124
      %vm126 = vweird.f32 %v119
      %vm127 = vweird.f32 %v121
      %vm128 = vmor %vm126, %vm127
      %v129 = vsel %vm128, %v121, %v125
      %v130 = vand.u32 2147483647, %v119
      %vm131 = vcmp.eq.f32.partialorder %v130, 8.507059e+37
      %v132 = vand.u32 %v119, 2147483648
      %v133 = vor.u32 1.1754944e-38, %v132
      %v134 = vsel %vm131, %v133, %v129
      %v135 = vmul.f32 1.0, %v134
      %v136 = vrcp.pop %v120
      %v137 = vmul.f32 %v120, %v136
      %v138 = vsub.f32 1.0, %v137
      %v139 = vmul.f32 %v136, %v138
      %v140 = vadd.f32 %v136, %v139
      %vm141 = vweird.f32 %v120
      %vm142 = vweird.f32 %v136
      %vm143 = vmor %vm141, %vm142
      %v144 = vsel %vm143, %v136, %v140
      %v145 = vand.u32 2147483647, %v120
      %vm146 = vcmp.eq.f32.partialorder %v145, 8.507059e+37
      %v147 = vand.u32 %v120, 2147483648
      %v148 = vor.u32 1.1754944e-38, %v147
      %v149 = vsel %vm146, %v148, %v144
      %v150 = vmul.f32 1.0, %v149
      %v151 = vld [vmem:[#allocation6] sm:$0x1]
      %v153 = vperm.slane %v151, 0
      %v155 = vmul.f32 %v153, %v135
      %v156 = vmul.f32 %v153, %v150
      %v157 = vmul.f32 %v85, %v155
      %v158 = vmul.f32 %v86, %v156
      %v159 = vld [vmem:[%s2] sm:$0x1]
      %v161 = vperm.slane %v159, 0
      %v163 = vadd.f32 %v157, %v161
      %v164 = vadd.f32 %v158, %v161
      %v165 = vpack.c.bf16 %v163, %v163
      %v166 = vpack.c.bf16 %v164, %v164
      %167 = vst [vmem:[#allocation2] sm:$0xf] %v165
      %168 = vst [vmem:[#allocation2 + $0x4] sm:$0xf] %v166
    $region37: #{tpu_custom_call.1} parent=1 // pred_fallthru
      _
    %v169 = vld [vmem:[#allocation2] sm:$0xf]
    %v170 = vld [vmem:[#allocation2 + $0x4] sm:$0xf]
    %v171 = vld [vmem:[#allocation8] sm:$0xf]
    %v172 = vld [vmem:[#allocation8 + $0x4] sm:$0xf]
    %v173 = vld [vmem:[#allocation8 + $0x8] sm:$0xf]
    %v174 = vld [vmem:[#allocation8 + $0xc] sm:$0xf]
    %v175 = vld [vmem:[#allocation8 + $0x10] sm:$0xf]
    %v176 = vld [vmem:[#allocation8 + $0x14] sm:$0xf]
    %v177 = vld [vmem:[#allocation8 + $0x18] sm:$0xf]
    %v178 = vld [vmem:[#allocation8 + $0x1c] sm:$0xf]
    %v179 = vld [vmem:[#allocation8 + $0x20] sm:$0xf]
    %v180 = vld [vmem:[#allocation8 + $0x24] sm:$0xf]
    %v181 = vld [vmem:[#allocation8 + $0x28] sm:$0xf]
    %v182 = vld [vmem:[#allocation8 + $0x2c] sm:$0xf]
    %v183 = vld [vmem:[#allocation8 + $0x30] sm:$0xf]
    %v184 = vld [vmem:[#allocation8 + $0x34] sm:$0xf]
    %v185 = vld [vmem:[#allocation8 + $0x38] sm:$0xf]
    %v186 = vld [vmem:[#allocation8 + $0x3c] sm:$0xf]
    %v189 = vunpack.c.l.b16 %v169
    %v190 = vunpack.c.l.b16 %v170
    %v191 = vpack.c.b16 %v190, %v189
    %v209 = vunpack.c.l.b16 %v171
    %v210 = vunpack.c.l.b16 %v172
    %v211 = vunpack.c.l.b16 %v173
    %v212 = vunpack.c.l.b16 %v174
    %v213 = vunpack.c.l.b16 %v175
    %v214 = vunpack.c.l.b16 %v176
    %v215 = vunpack.c.l.b16 %v177
    %v216 = vunpack.c.l.b16 %v178
    %v217 = vunpack.c.l.b16 %v179
    %v218 = vunpack.c.l.b16 %v180
    %v219 = vunpack.c.l.b16 %v181
    %v220 = vunpack.c.l.b16 %v182
    %v221 = vunpack.c.l.b16 %v183
    %v222 = vunpack.c.l.b16 %v184
    %v223 = vunpack.c.l.b16 %v185
    %v224 = vunpack.c.l.b16 %v186
    %v225 = vpack.c.b16 %v210, %v209
    %v226 = vpack.c.b16 %v212, %v211
    %v227 = vpack.c.b16 %v214, %v213
    %v228 = vpack.c.b16 %v216, %v215
    %v229 = vpack.c.b16 %v218, %v217
    %v230 = vpack.c.b16 %v220, %v219
    %v231 = vpack.c.b16 %v222, %v221
    %v232 = vpack.c.b16 %v224, %v223
    %241 = vmatpush.bf16.msra.mxu0 %v232
    %242 = vmatpush.bf16.msra.mxu0 %v231
    %243 = vmatpush.bf16.msra.mxu0 %v230
    %244 = vmatpush.bf16.msra.mxu0 %v229
    %245 = vmatpush.bf16.msra.mxu0 %v228
    %246 = vmatpush.bf16.msra.mxu0 %v227
    %247 = vmatpush.bf16.msra.mxu0 %v226
    %248 = vmatpush.bf16.msra.mxu0 %v225
    %249 = vmatmul.bf16.gmra.mxu0 %v191
    %v250 = vpop.f32.mrf.mxu0
    %v251 = vadd.f32 0.0, %v250
    %v252 = vpop.f32.mrf.mxu0
    %v253 = vadd.f32 0.0, %v252
    %254 = vdwg.mxu0
    %s255 = smul.u32 0, 128
    %s256 = sshra.s32 %s255, 7
    %s257 = sand.u32 %s255, 127
    %s258 = scalar_lea.vmem [#allocation3], %s256
    %v259 = vld [vmem:[%s258] sm:$0xff]
    %v260 = vld [vmem:[%s258 + $0x8] sm:$0xff]
    %v261 = vadd.f32 %v259, %v251
    %v262 = vadd.f32 %v260, %v253
    %v263 = vld [vmem:[%s4] sm:$0x1]
    %v265 = vperm.slane %v263, 0
    %v267 = vadd.f32 %v261, %v265
    %v268 = vadd.f32 %v262, %v265
    %269 = vst [vmem:[#allocation9] sm:$0xff] %v267
    %270 = vst [vmem:[#allocation9 + $0x8] sm:$0xff] %v268
    // Predicated region
    $region38: #{tpu_custom_call.1} parent=1 // pred_check
      _
    $region39: #{tpu_custom_call.1} parent=1 // pred_check_branch
      %272 = sbr.rel (0) target = $region41
    $region40: #{tpu_custom_call.1} parent=1 // pred_region
      %274 = vsyncadd [#allocation5], 0
      %s275 = sshll.u32 [#allocation9], 4
      %s276 = int_to_ptr.vmem [resolvable:$true] %s275
      %s277 = sshll.u32 %s5, 4
      %s278 = int_to_ptr.hbm [resolvable:$true] %s277
      %283 = dma.vmem_to_hbm [thread:$0]  %s276, 256, %s278, [#allocation5], 128, 128, 8
    $region41: #{tpu_custom_call.1} parent=1 // pred_fallthru
      _
    // Predicated region
    $region42: #{tpu_custom_call.1} parent=1 // pred_check
      _
    $region43: #{tpu_custom_call.1} parent=1 // pred_check_branch
      %285 = sbr.rel (0) target = $region45
    $region44: #{tpu_custom_call.1} parent=1 // pred_region
      %287 = dma.done [#allocation5], 256
    $region45: #{tpu_custom_call.1} parent=1 // pred_fallthru
      _
    %288 = vsyncpa [#allocation4], 1
    %289 = vsyncpa [#allocation7], 1
    %290 = vsyncpa [#allocation5], 1

</llo_original>
